<compile_context>
chip_gen: v7x
topology: tpu7x:2x2x1
jax: 0.10.0
libtpu: 0.0.40
codegen_flags: <defaults>
</compile_context>

<pallas_src>
import functools

import jax
import jax.numpy as jnp
from jax.experimental import pallas as pl
from jax.experimental.pallas import tpu as pltpu


# ----------------------------------------------------------------------------
# Kernel 1: hidden layer  h = relu(z @ W1 + b1)   (tiny, runs once, no grid)
# ----------------------------------------------------------------------------
def _hidden_kernel(z_ref, w1_ref, b1_ref, h_ref):
    h = jnp.dot(z_ref[...], w1_ref[...], preferred_element_type=jnp.float32)
    h = jnp.maximum(h + b1_ref[...], 0.0)            # bias broadcast + ReLU
    h_ref[...] = h.astype(h_ref.dtype)               # emit bf16 for the MXU


# ----------------------------------------------------------------------------
# Kernel 2: output layer  out = tanh(h @ W2 + b2), tiled over output dim
# ----------------------------------------------------------------------------
def _output_kernel(h_ref, w2_ref, b2_ref, o_ref):
    # bf16 x bf16 MXU matmul, f32 accumulation.
    acc = jnp.dot(h_ref[...], w2_ref[...], preferred_element_type=jnp.float32)
    acc = acc + b2_ref[...]                           # (1, tn) f32 bias tile
    o_ref[...] = jnp.tanh(acc).astype(o_ref.dtype)


@functools.partial(jax.jit, static_argnames=("tn",))
def generator_forward(z, w1, b1, w2, b2, *, tn=4096):
    """Fused Generator forward pass.

    z : (B, latent_dim) f32
    w1: (latent_dim, hidden) f32     b1: (hidden,) f32
    w2: (hidden, output_dim) f32     b2: (output_dim,) f32
    returns (B, output_dim) f32
    W2 is internally cast to bf16 (streamed at half the bytes); accumulation
    stays in f32.
    """
    B, latent = z.shape
    hidden = w1.shape[1]
    out_dim = w2.shape[1]

    # --- layer 1 (hoisted out of the streaming loop; computed exactly once) --
    b1_2d = b1.reshape(1, hidden).astype(jnp.float32)
    h = pl.pallas_call(
        _hidden_kernel,
        out_shape=jax.ShapeDtypeStruct((B, hidden), jnp.bfloat16),
        in_specs=[pl.BlockSpec(memory_space=pltpu.MemorySpace.VMEM)] * 3,
        out_specs=pl.BlockSpec(memory_space=pltpu.MemorySpace.VMEM),
    )(z, w1, b1_2d)

    # --- layer 2: pad output dim to a lane-dense multiple of tn --------------
    out_pad = pl.cdiv(out_dim, tn) * tn
    pad = out_pad - out_dim
    w2_bf = w2.astype(jnp.bfloat16)
    b2_f = b2.astype(jnp.float32)
    if pad:
        w2_bf = jnp.pad(w2_bf, ((0, 0), (0, pad)))
        b2_f = jnp.pad(b2_f, (0, pad))
    b2_2d = b2_f.reshape(1, out_pad)

    n_tiles = out_pad // tn
    out_padded = pl.pallas_call(
        _output_kernel,
        out_shape=jax.ShapeDtypeStruct((B, out_pad), jnp.float32),
        grid_spec=pltpu.PrefetchScalarGridSpec(
            num_scalar_prefetch=0,
            grid=(n_tiles,),
            in_specs=[
                pl.BlockSpec((B, hidden), lambda j: (0, 0)),     # h (resident)
                pl.BlockSpec((hidden, tn), lambda j: (0, j)),    # W2 tile bf16
                pl.BlockSpec((1, tn), lambda j: (0, j)),         # b2 tile
            ],
            out_specs=pl.BlockSpec((B, tn), lambda j: (0, j)),   # output tile
        ),
        compiler_params=pltpu.CompilerParams(
            dimension_semantics=("parallel",),
        ),
    )(h, w2_bf, b2_2d)

    return out_padded[:, :out_dim] if pad else out_padded


if __name__ == "__main__":
    # Small shapes consistent with the module: latent_dim=100, hidden=128.
    # The real module uses output_dim=220500 (NOT a multiple of 128); here we
    # use a small output_dim that also exercises the padding + slicing path.
    B = 8
    latent_dim = 100
    hidden_dim = 128
    output_dim = 3000        # not a multiple of tn -> tests padding path
    tn = 1024                # real-shape default is 4096

    key = jax.random.PRNGKey(0)
    kz, k1, k2, k3, k4 = jax.random.split(key, 5)
    lim1 = 1.0 / jnp.sqrt(float(latent_dim))   # PyTorch nn.Linear default init
    lim2 = 1.0 / jnp.sqrt(float(hidden_dim))
    z = jax.random.normal(kz, (B, latent_dim), jnp.float32)
    w1 = jax.random.uniform(k1, (latent_dim, hidden_dim), jnp.float32, -lim1, lim1)
    b1 = jax.random.uniform(k2, (hidden_dim,), jnp.float32, -lim1, lim1)
    w2 = jax.random.uniform(k3, (hidden_dim, output_dim), jnp.float32, -lim2, lim2)
    b2 = jax.random.uniform(k4, (output_dim,), jnp.float32, -lim2, lim2)

    out = jax.block_until_ready(generator_forward(z, w1, b1, w2, b2, tn=tn))

    # Reference with the same numerical recipe (bf16-rounded h and W2, f32
    # accumulation).  Residual slack covers matmul rounding-order differences
    # and rare bf16 rounding flips of h (each contributes <~1e-3 after tanh).
    h_f = jnp.maximum(z @ w1 + b1, 0.0)
    h_b = h_f.astype(jnp.bfloat16).astype(jnp.float32)
    w2_b = w2.astype(jnp.bfloat16).astype(jnp.float32)
    ref = jnp.tanh(h_b @ w2_b + b2)

    assert out.shape == (B, output_dim)
    assert jnp.allclose(out, ref, atol=1e-2, rtol=1e-2), float(
        jnp.max(jnp.abs(out - ref))
    )
    print("KERNEL_OK")
</pallas_src>

<mosaic_0001>
module attributes {stable_mosaic.version = 11 : i64} {
  func.func @_hidden_kernel(%arg0: memref<8x100xf32, #tpu.memory_space<vmem>>, %arg1: memref<100x128xf32, #tpu.memory_space<vmem>>, %arg2: memref<1x128xf32, #tpu.memory_space<vmem>>, %arg3: memref<8x128xbf16, #tpu.memory_space<vmem>>) attributes {dimension_semantics = [], scalar_prefetch = 0 : i64, scratch_operands = 0 : i64, tpu.core_type = #tpu.core_type<tc>} {
    %c0 = arith.constant 0 : index
    %c0_0 = arith.constant 0 : index
    %0 = vector.load %arg0[%c0, %c0_0] : memref<8x100xf32, #tpu.memory_space<vmem>>, vector<8x100xf32>
    %c0_1 = arith.constant 0 : index
    %c0_2 = arith.constant 0 : index
    %1 = vector.load %arg1[%c0_1, %c0_2] : memref<100x128xf32, #tpu.memory_space<vmem>>, vector<100x128xf32>
    %cst = arith.constant dense<0.000000e+00> : vector<8x128xf32>
    %2 = tpu.matmul %0, %1, %cst {dimension_numbers = #tpu.dot_dimension_numbers<[1], [0], [0], [1], [0, 0, 1, 1], [], []>} : vector<8x100xf32>, vector<100x128xf32>, vector<8x128xf32> -> vector<8x128xf32>
    %c0_3 = arith.constant 0 : index
    %c0_4 = arith.constant 0 : index
    %3 = vector.load %arg2[%c0_3, %c0_4] : memref<1x128xf32, #tpu.memory_space<vmem>>, vector<1x128xf32>
    %4 = vector.broadcast %3 : vector<1x128xf32> to vector<8x128xf32>
    %5 = arith.addf %2, %4 : vector<8x128xf32>
    %cst_5 = arith.constant 0.000000e+00 : f32
    %6 = vector.broadcast %cst_5 : f32 to vector<8x128xf32>
    %7 = arith.maximumf %5, %6 : vector<8x128xf32>
    %8 = arith.truncf %7 : vector<8x128xf32> to vector<8x128xbf16>
    %c0_6 = arith.constant 0 : index
    %c0_7 = arith.constant 0 : index
    %9 = vector.load %arg3[%c0_6, %c0_7] : memref<8x128xbf16, #tpu.memory_space<vmem>>, vector<8x128xbf16>
    tpu.vector_store %arg3[%c0_6, %c0_7], %8 {strides = array<i32>} : memref<8x128xbf16, #tpu.memory_space<vmem>>, vector<8x128xbf16>,
    return
  }
}

module attributes {stable_mosaic.version = 11 : i64} {
  func.func @_output_kernel(%arg0: i32, %arg1: memref<8x128xbf16, #tpu.memory_space<vmem>>, %arg2: memref<128x1024xbf16, #tpu.memory_space<vmem>>, %arg3: memref<1x1024xf32, #tpu.memory_space<vmem>>, %arg4: memref<8x1024xf32, #tpu.memory_space<vmem>>) attributes {dimension_semantics = [#tpu.dimension_semantics<parallel>], iteration_bounds = array<i64: 3>, scalar_prefetch = 0 : i64, scratch_operands = 0 : i64, tpu.core_type = #tpu.core_type<tc>, window_params = [{pipeline_mode = #tpu.pipeline_mode<synchronous>, transform_indices = @transform_0, window_bounds = array<i64: 8, 128>}, {transform_indices = @transform_1, window_bounds = array<i64: 128, 1024>}, {transform_indices = @transform_2, window_bounds = array<i64: 1, 1024>}, {transform_indices = @transform_3, window_bounds = array<i64: 8, 1024>}]} {
    %c0 = arith.constant 0 : index
    %c0_0 = arith.constant 0 : index
    %0 = vector.load %arg1[%c0, %c0_0] : memref<8x128xbf16, #tpu.memory_space<vmem>>, vector<8x128xbf16>
    %c0_1 = arith.constant 0 : index
    %c0_2 = arith.constant 0 : index
    %1 = vector.load %arg2[%c0_1, %c0_2] : memref<128x1024xbf16, #tpu.memory_space<vmem>>, vector<128x1024xbf16>
    %cst = arith.constant dense<0.000000e+00> : vector<8x1024xf32>
    %2 = tpu.matmul %0, %1, %cst {dimension_numbers = #tpu.dot_dimension_numbers<[1], [0], [0], [1], [0, 0, 1, 1], [], []>} : vector<8x128xbf16>, vector<128x1024xbf16>, vector<8x1024xf32> -> vector<8x1024xf32>
    %c0_3 = arith.constant 0 : index
    %c0_4 = arith.constant 0 : index
    %3 = vector.load %arg3[%c0_3, %c0_4] : memref<1x1024xf32, #tpu.memory_space<vmem>>, vector<1x1024xf32>
    %4 = vector.broadcast %3 : vector<1x1024xf32> to vector<8x1024xf32>
    %5 = arith.addf %2, %4 : vector<8x1024xf32>
    %6 = math.tanh %5 : vector<8x1024xf32>
    %c0_5 = arith.constant 0 : index
    %c0_6 = arith.constant 0 : index
    %7 = vector.load %arg4[%c0_5, %c0_6] : memref<8x1024xf32, #tpu.memory_space<vmem>>, vector<8x1024xf32>
    tpu.vector_store %arg4[%c0_5, %c0_6], %6 {strides = array<i32>} : memref<8x1024xf32, #tpu.memory_space<vmem>>, vector<8x1024xf32>,
    return
  }
  func.func @transform_0(%arg0: i32) -> (i32, i32) {
    %c0_i32 = arith.constant 0 : i32
    %c0_i32_0 = arith.constant 0 : i32
    %c0_i32_1 = arith.constant 0 : i32
    return %c0_i32, %c0_i32_0 : i32, i32
  }
  func.func @transform_1(%arg0: i32) -> (i32, i32) {
    %c0_i32 = arith.constant 0 : i32
    %c0_i32_0 = arith.constant 0 : i32
    return %c0_i32, %arg0 : i32, i32
  }
  func.func @transform_2(%arg0: i32) -> (i32, i32) {
    %c0_i32 = arith.constant 0 : i32
    %c0_i32_0 = arith.constant 0 : i32
    return %c0_i32, %arg0 : i32, i32
  }
  func.func @transform_3(%arg0: i32) -> (i32, i32) {
    %c0_i32 = arith.constant 0 : i32
    %c0_i32_0 = arith.constant 0 : i32
    return %c0_i32, %arg0 : i32, i32
  }
}

</mosaic_0001>

<llo_original>
// kernel: generator_forward.2
$region0: #{generator_forward.2}
  #allocation0 [shape = 'u32[]', space=smem, size = 0x4, offset = 0x4, fixed_abs, tag = 'smem constant byte address 0x4 - core index']
  #allocation1 [shape = 'u32[144,128]{1,0:T(1,128)}', space=vmem, size = 0x12000, scoped, tag = 'internal scratch']
  %s0 = inlined_call_operand.vmem [shape: f32[8,100], index: 0, kind: input, shape index: {}]
  %s1 = inlined_call_operand.vmem [shape: f32[100,128], index: 1, kind: input, shape index: {}]
  %s2 = inlined_call_operand.vmem [shape: f32[1,128], index: 2, kind: input, shape index: {}]
  %s3 = inlined_call_operand.vmem [shape: bf16[8,128], index: 3, kind: output, shape index: {}]
  %s4 = sld [smem:[#allocation0]]
  $region22: #{generator_forward.2} parent=0
    _
  %s6 = ssub.s32 1, %s4
  %s7 = scalar_select 0, %s6, %s4
  // Predicated region
  $region2: #{generator_forward.2} parent=0 // pred_check
    _
  $region3: #{generator_forward.2} parent=0 // pred_check_branch
    %9 = sbr.rel (0) target = $region5
  $region4: #{generator_forward.2} parent=0 // pred_region
    _
  $region5: #{generator_forward.2} parent=0 // pred_fallthru
    _
  // Predicated region
  $region6: #{generator_forward.2} parent=0 // pred_check
    _
  $region7: #{generator_forward.2} parent=0 // pred_check_branch
    %11 = sbr.rel (0) target = $region9
  $region8: #{generator_forward.2} parent=0 // pred_region
    _
  $region9: #{generator_forward.2} parent=0 // pred_fallthru
    _
  // Predicated region
  $region10: #{generator_forward.2} parent=0 // pred_check
    _
  $region11: #{generator_forward.2} parent=0 // pred_check_branch
    %13 = sbr.rel (0) target = $region13
  $region12: #{generator_forward.2} parent=0 // pred_region
    _
  $region13: #{generator_forward.2} parent=0 // pred_fallthru
    _
  %v14 = vld [vmem:[%s0] sm:$0xff]
  %v15 = vld [vmem:[%s1] sm:$0xff]
  %v16 = vld [vmem:[%s1 + $0x8] sm:$0xff]
  %v17 = vld [vmem:[%s1 + $0x10] sm:$0xff]
  %v18 = vld [vmem:[%s1 + $0x18] sm:$0xff]
  %v19 = vld [vmem:[%s1 + $0x20] sm:$0xff]
  %v20 = vld [vmem:[%s1 + $0x28] sm:$0xff]
  %v21 = vld [vmem:[%s1 + $0x30] sm:$0xff]
  %v22 = vld [vmem:[%s1 + $0x38] sm:$0xff]
  %v23 = vld [vmem:[%s1 + $0x40] sm:$0xff]
  %v24 = vld [vmem:[%s1 + $0x48] sm:$0xff]
  %v25 = vld [vmem:[%s1 + $0x50] sm:$0xff]
  %v26 = vld [vmem:[%s1 + $0x58] sm:$0xff]
  %v27 = vld [vmem:[%s1 + $0x60] sm:$0xf]
  %v28 = vld [vmem:[%s2] sm:$0x1]
  %v30 = vlaneseq
  %v31 = vshrl.u32 %v30, 7
  %v32 = vsub.s32 0, %v31
  %v33 = vrot.slane %v28, %v32
  %vm35 = vcmask 818176
  %v37 = vsel %vm35, %v14, 0
  %vm39 = vcmask 1043456
  %v41 = vsel %vm39, %v27, 0
  %43 = vmatprep.subr.mxu0 0.0
  %44 = vmatpush1.msra.mxu0 %v15
  %45 = vmatprep.subr.mxu0 0.0
  %46 = vmatpush1.msra.mxu0 %v16
  %47 = vmatprep.subr.mxu0 0.0
  %48 = vmatpush1.msra.mxu0 %v17
  %49 = vmatprep.subr.mxu0 0.0
  %50 = vmatpush1.msra.mxu0 %v18
  %51 = vmatprep.subr.mxu0 0.0
  %52 = vmatpush1.msra.mxu0 %v19
  %53 = vmatprep.subr.mxu0 0.0
  %54 = vmatpush1.msra.mxu0 %v20
  %55 = vmatprep.subr.mxu0 0.0
  %56 = vmatpush1.msra.mxu0 %v21
  %57 = vmatprep.subr.mxu0 0.0
  %58 = vmatpush1.msra.mxu0 %v22
  %59 = vmatprep.subr.mxu0 0.0
  %60 = vmatpush1.msra.mxu0 %v23
  %61 = vmatprep.subr.mxu0 0.0
  %62 = vmatpush1.msra.mxu0 %v24
  %63 = vmatprep.subr.mxu0 0.0
  %64 = vmatpush1.msra.mxu0 %v25
  %65 = vmatprep.subr.mxu0 0.0
  %66 = vmatpush1.msra.mxu0 %v26
  %67 = vmatprep.subr.mxu0 0.0
  %68 = vmatpush1.msra.mxu0 %v41
  %69 = vmatprep.subr.mxu0 0.0
  %70 = vmatpush1.msra.mxu0 0.0
  %71 = vmatprep.subr.mxu0 0.0
  %72 = vmatpush1.msra.mxu0 0.0
  %73 = vmatprep.subr.mxu0 0.0
  %74 = vmatpush1.msra.mxu0 0.0
  %75 = vmatprep.subr.mxu0 0.0
  %76 = vmatpush1.msra.mxu0 0.0
  %77 = vmatprep.subr.mxu0 0.0
  %78 = vmatpush1.msra.mxu0 0.0
  %79 = vmatprep.subr.mxu0 0.0
  %80 = vmatpush1.msra.mxu0 0.0
  %81 = vmatprep.subr.mxu0 0.0
  %82 = vmatpush1.msra.mxu0 0.0
  %83 = vmatprep.subr.mxu0 0.0
  %84 = vmatpush1.msra.mxu0 0.0
  %85 = vmatprep.subr.mxu0 0.0
  %86 = vmatpush1.msra.mxu0 0.0
  %87 = vmatprep.subr.mxu0 0.0
  %88 = vmatpush1.msra.mxu0 0.0
  %89 = vmatprep.subr.mxu0 0.0
  %90 = vmatpush1.msra.mxu0 0.0
  %91 = vmatprep.subr.mxu0 0.0
  %92 = vmatpush1.msra.mxu0 0.0
  %93 = vmatprep.subr.mxu0 0.0
  %94 = vmatpush1.msra.mxu0 0.0
  %95 = vmatprep.subr.mxu0 0.0
  %96 = vmatpush1.msra.mxu0 0.0
  %97 = vmatprep.subr.mxu0 0.0
  %98 = vmatpush1.msra.mxu0 0.0
  %99 = vmatprep.subr.mxu0 0.0
  %100 = vmatpush1.msra.mxu0 0.0
  %101 = vmatprep.subr.mxu0 0.0
  %102 = vmatpush1.msra.mxu0 0.0
  %103 = vmatprep.subr.mxu0 0.0
  %104 = vmatpush1.msra.mxu0 0.0
  %105 = vmatprep.subr.mxu0 0.0
  %106 = vmatpush1.msra.mxu0 0.0
  %107 = vmatprep.mubr.f32.mxu0 0.0
  %108 = vmatmul.mubr.f32.gmra.mrb[0].mxu0 %v37
  %v109 = vpop.f32.mrb[0].mxu0
  %v110 = vadd.f32 %v33, %v109
  %v111 = vpop.f32.mrb[0].mxu0
  %112 = vdwg.mxu0
  %v113 = vmax.f32 %v110, 0.0
  %v114 = vpack.c.bf16 %v113, %v113
  %115 = vst [vmem:[%s3] sm:$0xf] %v114
  // Predicated region
  $region14: #{generator_forward.2} parent=0 // pred_check
    _
  $region15: #{generator_forward.2} parent=0 // pred_check_branch
    %117 = sbr.rel (0) target = $region17
  $region16: #{generator_forward.2} parent=0 // pred_region
    _
  $region17: #{generator_forward.2} parent=0 // pred_fallthru
    _
  // Predicated region
  $region18: #{generator_forward.2} parent=0 // pred_check
    _
  $region19: #{generator_forward.2} parent=0 // pred_check_branch
    %119 = sbr.rel (0) target = $region21
  $region20: #{generator_forward.2} parent=0 // pred_region
    _
  $region21: #{generator_forward.2} parent=0 // pred_fallthru
    _

// kernel: generator_forward.3
$region0: #{generator_forward.3}
  #allocation0 [shape = 'u32[]', space=smem, size = 0x4, offset = 0x4, fixed_abs, tag = 'smem constant byte address 0x4 - core index']
  #allocation1 [shape = 'u32[144,128]{1,0:T(1,128)}', space=vmem, size = 0x12000, scoped, tag = 'internal scratch']
  %s0 = inlined_call_operand.vmem [shape: bf16[8,128], index: 0, kind: input, shape index: {}]
  %s1 = inlined_call_operand.vmem [shape: bf16[128,3072], index: 1, kind: input, shape index: {}]
  %s2 = inlined_call_operand.vmem [shape: f32[1,3072], index: 2, kind: input, shape index: {}]
  %s3 = inlined_call_operand.hbm [shape: f32[8,3072], index: 3, kind: output, shape index: {}]
  %s4 = sld [smem:[#allocation0]]
  $region68: #{generator_forward.3} parent=0
    _
  %s6 = ssub.s32 1, %s4
  %s7 = scalar_select 0, %s6, %s4
  $region1: #{generator_forward.3} parent=0
    #allocation2 [shape = 'u8[524288]{0}', space=vmem, size = 0x80000, scoped, tag = 'input window, operand 1']
    #allocation3 [shape = 'u8[65536]{0}', space=vmem, size = 0x10000, scoped, tag = 'output window, operand 0']
    #allocation4 [shape = 's32[2]{0}', space=sflag, size = 0x8, scoped, tag = 'scoped memory for generator_forward.3']
    %8 = vsyncpa [#allocation4], 0
    %s9 = scalar_lea.sflag [#allocation4], 1
    %10 = vsyncpa %s9, 0
    loop: start=0, step=1, limit=5
    $region2: #{generator_forward.3} parent=1 // loop_pre_header
      _
    $region3: #{generator_forward.3} parent=1 // loop_header
      %s12 = sphi 0, %s16
      %p13 = scmp.ge.s32.totalorder %s12, 5
      %s20 = sphi 0, %s20
      %s22 = sphi 0, %s20
      %s23 = sphi 0, %s22
      %s37 = sphi 0, %s23
      %s43 = sphi 0, %s45
      %s46 = sphi 0, %s43
      %s47 = sphi 0, %s46
      %s63 = sphi 0, %s47
      %s69 = sphi 0, %s71
      %s72 = sphi 0, %s69
      %s73 = sphi 0, %s72
      %s89 = sphi 0, %s73
      %s95 = sphi 0, %s97
      %s98 = sphi 0, %s95
      %s99 = sphi 0, %s98
      %s115 = sphi 0, %s99
    $region4: #{generator_forward.3} parent=1 // loop_header_branch
      %15 = sbr.rel (%p13) target = $region8
    $region5: #{generator_forward.3} parent=1 // loop_body
      %s17 = ssub.s32 %s12, 1
      %s18 = ssub.s32 %s12, 2
      %s19 = sadd.s32 %s12, 1
      %s21 = sadd.s32 %s20, 1
      %p24 = scmp.eq.s32.totalorder %s12, 2
      %p25 = scmp.ne.s32.totalorder %s20, %s22
      %p26 = scmp.eq.s32.totalorder %s12, 0
      %p27 = por %p25, %p26
      %p28 = scmp.ne.s32.totalorder %s20, %s22
      %p29 = scmp.eq.s32.totalorder %s17, 2
      %p30 = por %p28, %p29
      %p31 = scmp.ne.s32.totalorder %s22, %s23
      %p32 = scmp.eq.s32.totalorder %s17, 0
      %p33 = por %p31, %p32
      %p34 = scmp.ne.s32.totalorder %s22, %s23
      %p35 = scmp.eq.s32.totalorder %s18, 2
      %p36 = por %p34, %p35
      %p38 = scmp.ne.s32.totalorder %s23, %s37
      %p39 = scmp.eq.s32.totalorder %s18, 0
      %p40 = por %p38, %p39
      %s41 = ssub.s32 %s12, %s19
      %p42 = scmp.eq.s32.totalorder %s41, 0
      %s44 = sadd.s32 %s43, 1
      %s45 = scalar_select %p42, %s43, %s44
      %p48 = pneg %p42
      %p49 = scmp.eq.s32.totalorder %s12, 2
      %p50 = por %p48, %p49
      %p51 = scmp.ne.s32.totalorder %s43, %s46
      %p52 = scmp.eq.s32.totalorder %s12, 0
      %p53 = por %p51, %p52
      %p54 = scmp.ne.s32.totalorder %s43, %s46
      %p55 = scmp.eq.s32.totalorder %s17, 2
      %p56 = por %p54, %p55
      %p57 = scmp.ne.s32.totalorder %s46, %s47
      %p58 = scmp.eq.s32.totalorder %s17, 0
      %p59 = por %p57, %p58
      %p60 = scmp.ne.s32.totalorder %s46, %s47
      %p61 = scmp.eq.s32.totalorder %s18, 2
      %p62 = por %p60, %p61
      %p64 = scmp.ne.s32.totalorder %s47, %s63
      %p65 = scmp.eq.s32.totalorder %s18, 0
      %p66 = por %p64, %p65
      %s67 = ssub.s32 %s12, %s19
      %p68 = scmp.eq.s32.totalorder %s67, 0
      %s70 = sadd.s32 %s69, 1
      %s71 = scalar_select %p68, %s69, %s70
      %p74 = pneg %p68
      %p75 = scmp.eq.s32.totalorder %s12, 2
      %p76 = por %p74, %p75
      %p77 = scmp.ne.s32.totalorder %s69, %s72
      %p78 = scmp.eq.s32.totalorder %s12, 0
      %p79 = por %p77, %p78
      %p80 = scmp.ne.s32.totalorder %s69, %s72
      %p81 = scmp.eq.s32.totalorder %s17, 2
      %p82 = por %p80, %p81
      %p83 = scmp.ne.s32.totalorder %s72, %s73
      %p84 = scmp.eq.s32.totalorder %s17, 0
      %p85 = por %p83, %p84
      %p86 = scmp.ne.s32.totalorder %s72, %s73
      %p87 = scmp.eq.s32.totalorder %s18, 2
      %p88 = por %p86, %p87
      %p90 = scmp.ne.s32.totalorder %s73, %s89
      %p91 = scmp.eq.s32.totalorder %s18, 0
      %p92 = por %p90, %p91
      %s93 = ssub.s32 %s12, %s19
      %p94 = scmp.eq.s32.totalorder %s93, 0
      %s96 = sadd.s32 %s95, 1
      %s97 = scalar_select %p94, %s95, %s96
      %p100 = pneg %p94
      %p101 = scmp.eq.s32.totalorder %s12, 2
      %p102 = por %p100, %p101
      %p103 = scmp.ne.s32.totalorder %s95, %s98
      %p104 = scmp.eq.s32.totalorder %s12, 0
      %p105 = por %p103, %p104
      %p106 = scmp.ne.s32.totalorder %s95, %s98
      %p107 = scmp.eq.s32.totalorder %s17, 2
      %p108 = por %p106, %p107
      %p109 = scmp.ne.s32.totalorder %s98, %s99
      %p110 = scmp.eq.s32.totalorder %s17, 0
      %p111 = por %p109, %p110
      %p112 = scmp.ne.s32.totalorder %s98, %s99
      %p113 = scmp.eq.s32.totalorder %s18, 2
      %p114 = por %p112, %p113
      %p116 = scmp.ne.s32.totalorder %s99, %s115
      %p117 = scmp.eq.s32.totalorder %s18, 0
      %p118 = por %p116, %p117
      %p119 = scmp.le.s32.totalorder 1, %s12
      %p120 = scmp.lt.s32.totalorder %s12, 4
      %p121 = pnand %p119, %p120
      %p122 = pneg %p121
      // Predicated region
      $region9: #{generator_forward.3} parent=5 // pred_check
        _
      $region10: #{generator_forward.3} parent=5 // pred_check_branch
        %124 = sbr.rel (%p121) target = $region12
      $region11: #{generator_forward.3} parent=5 // pred_region
        %s125 = ssub.s32 %s12, 1
        // Predicated region
        $region13: #{generator_forward.3} parent=11 // pred_check
          %p126 = pneg %p33
        $region14: #{generator_forward.3} parent=11 // pred_check_branch
          %128 = sbr.rel (%p126) target = $region16
        $region15: #{generator_forward.3} parent=11 // pred_region
          _
        $region16: #{generator_forward.3} parent=11 // pred_fallthru
          _
      $region12: #{generator_forward.3} parent=5 // pred_fallthru
        _
      %p129 = scmp.lt.s32.totalorder %s12, 3
      // Predicated region
      $region17: #{generator_forward.3} parent=5 // pred_check
        %p130 = pneg %p129
      $region18: #{generator_forward.3} parent=5 // pred_check_branch
        %132 = sbr.rel (%p130) target = $region20
      $region19: #{generator_forward.3} parent=5 // pred_region
        // Predicated region
        $region21: #{generator_forward.3} parent=19 // pred_check
          %p133 = pneg %p53
        $region22: #{generator_forward.3} parent=19 // pred_check_branch
          %135 = sbr.rel (%p133) target = $region24
        $region23: #{generator_forward.3} parent=19 // pred_region
          %s136 = sand.u32 %s43, 1
          %s137 = sand.u32 %s43, 1
          %s138 = smul.addr %s137, 512
          %s139 = scalar_lea.vmem [#allocation2], %s138
          %s140 = smul.u32 8, %s12
          %s141 = smul.addr %s140, 4
          %s142 = scalar_lea.vmem %s1, %s141
          // Predicated region
          $region25: #{generator_forward.3} parent=23 // pred_check
            _
          $region26: #{generator_forward.3} parent=23 // pred_check_branch
            %144 = sbr.rel (0) target = $region28
          $region27: #{generator_forward.3} parent=23 // pred_region
            // Predicated region
            $region29: #{generator_forward.3} parent=27 // pred_check
              _
            $region30: #{generator_forward.3} parent=27 // pred_check_branch
              %146 = sbr.rel (0) target = $region32
            $region31: #{generator_forward.3} parent=27 // pred_region
              loop: start=0, step=1, limit=1
              $region33: #{generator_forward.3} parent=31 // loop_pre_header
                _
              $region34: #{generator_forward.3} parent=31 // loop_header
                %s148 = sphi 0, %s152
                %p149 = scmp.ge.s32.totalorder %s148, 1
                %s153 = sphi %s142, %s142
                %s154 = sphi %s139, %s139
              $region35: #{generator_forward.3} parent=31 // loop_header_branch
                %151 = sbr.rel (%p149) target = $region39
              $region36: #{generator_forward.3} parent=31 // loop_body
                %v155 = vld [vmem:[%s153] sm:$0xff]
                %156 = vst [vmem:[%s154] sm:$0xff] %v155
                %v157 = vld [vmem:[%s153 + $0x8] sm:$0xff]
                %158 = vst [vmem:[%s154 + $0x8] sm:$0xff] %v157
                %v159 = vld [vmem:[%s153 + $0x10] sm:$0xff]
                %160 = vst [vmem:[%s154 + $0x10] sm:$0xff] %v159
                %v161 = vld [vmem:[%s153 + $0x18] sm:$0xff]
                %162 = vst [vmem:[%s154 + $0x18] sm:$0xff] %v161
                %v163 = vld [vmem:[%s153 + $0x60] sm:$0xff]
                %164 = vst [vmem:[%s154 + $0x20] sm:$0xff] %v163
                %v165 = vld [vmem:[%s153 + $0x68] sm:$0xff]
                %166 = vst [vmem:[%s154 + $0x28] sm:$0xff] %v165
                %v167 = vld [vmem:[%s153 + $0x70] sm:$0xff]
                %168 = vst [vmem:[%s154 + $0x30] sm:$0xff] %v167
                %v169 = vld [vmem:[%s153 + $0x78] sm:$0xff]
                %170 = vst [vmem:[%s154 + $0x38] sm:$0xff] %v169
                %v171 = vld [vmem:[%s153 + $0xc0] sm:$0xff]
                %172 = vst [vmem:[%s154 + $0x40] sm:$0xff] %v171
                %v173 = vld [vmem:[%s153 + $0xc8] sm:$0xff]
                %174 = vst [vmem:[%s154 + $0x48] sm:$0xff] %v173
                %v175 = vld [vmem:[%s153 + $0xd0] sm:$0xff]
                %176 = vst [vmem:[%s154 + $0x50] sm:$0xff] %v175
                %v177 = vld [vmem:[%s153 + $0xd8] sm:$0xff]
                %178 = vst [vmem:[%s154 + $0x58] sm:$0xff] %v177
                %v179 = vld [vmem:[%s153 + $0x120] sm:$0xff]
                %180 = vst [vmem:[%s154 + $0x60] sm:$0xff] %v179
                %v181 = vld [vmem:[%s153 + $0x128] sm:$0xff]
                %182 = vst [vmem:[%s154 + $0x68] sm:$0xff] %v181
                %v183 = vld [vmem:[%s153 + $0x130] sm:$0xff]
                %184 = vst [vmem:[%s154 + $0x70] sm:$0xff] %v183
                %v185 = vld [vmem:[%s153 + $0x138] sm:$0xff]
                %186 = vst [vmem:[%s154 + $0x78] sm:$0xff] %v185
                %v187 = vld [vmem:[%s153 + $0x180] sm:$0xff]
                %188 = vst [vmem:[%s154 + $0x80] sm:$0xff] %v187
                %v189 = vld [vmem:[%s153 + $0x188] sm:$0xff]
                %190 = vst [vmem:[%s154 + $0x88] sm:$0xff] %v189
                %v191 = vld [vmem:[%s153 + $0x190] sm:$0xff]
                %192 = vst [vmem:[%s154 + $0x90] sm:$0xff] %v191
                %v193 = vld [vmem:[%s153 + $0x198] sm:$0xff]
                %194 = vst [vmem:[%s154 + $0x98] sm:$0xff] %v193
                %v195 = vld [vmem:[%s153 + $0x1e0] sm:$0xff]
                %196 = vst [vmem:[%s154 + $0xa0] sm:$0xff] %v195
                %v197 = vld [vmem:[%s153 + $0x1e8] sm:$0xff]
                %198 = vst [vmem:[%s154 + $0xa8] sm:$0xff] %v197
                %v199 = vld [vmem:[%s153 + $0x1f0] sm:$0xff]
                %200 = vst [vmem:[%s154 + $0xb0] sm:$0xff] %v199
                %v201 = vld [vmem:[%s153 + $0x1f8] sm:$0xff]
                %202 = vst [vmem:[%s154 + $0xb8] sm:$0xff] %v201
                %v203 = vld [vmem:[%s153 + $0x240] sm:$0xff]
                %204 = vst [vmem:[%s154 + $0xc0] sm:$0xff] %v203
                %v205 = vld [vmem:[%s153 + $0x248] sm:$0xff]
                %206 = vst [vmem:[%s154 + $0xc8] sm:$0xff] %v205
                %v207 = vld [vmem:[%s153 + $0x250] sm:$0xff]
                %208 = vst [vmem:[%s154 + $0xd0] sm:$0xff] %v207
                %v209 = vld [vmem:[%s153 + $0x258] sm:$0xff]
                %210 = vst [vmem:[%s154 + $0xd8] sm:$0xff] %v209
                %v211 = vld [vmem:[%s153 + $0x2a0] sm:$0xff]
                %212 = vst [vmem:[%s154 + $0xe0] sm:$0xff] %v211
                %v213 = vld [vmem:[%s153 + $0x2a8] sm:$0xff]
                %214 = vst [vmem:[%s154 + $0xe8] sm:$0xff] %v213
                %v215 = vld [vmem:[%s153 + $0x2b0] sm:$0xff]
                %216 = vst [vmem:[%s154 + $0xf0] sm:$0xff] %v215
                %v217 = vld [vmem:[%s153 + $0x2b8] sm:$0xff]
                %218 = vst [vmem:[%s154 + $0xf8] sm:$0xff] %v217
                %v219 = vld [vmem:[%s153 + $0x300] sm:$0xff]
                %220 = vst [vmem:[%s154 + $0x100] sm:$0xff] %v219
                %v221 = vld [vmem:[%s153 + $0x308] sm:$0xff]
                %222 = vst [vmem:[%s154 + $0x108] sm:$0xff] %v221
                %v223 = vld [vmem:[%s153 + $0x310] sm:$0xff]
                %224 = vst [vmem:[%s154 + $0x110] sm:$0xff] %v223
                %v225 = vld [vmem:[%s153 + $0x318] sm:$0xff]
                %226 = vst [vmem:[%s154 + $0x118] sm:$0xff] %v225
                %v227 = vld [vmem:[%s153 + $0x360] sm:$0xff]
                %228 = vst [vmem:[%s154 + $0x120] sm:$0xff] %v227
                %v229 = vld [vmem:[%s153 + $0x368] sm:$0xff]
                %230 = vst [vmem:[%s154 + $0x128] sm:$0xff] %v229
                %v231 = vld [vmem:[%s153 + $0x370] sm:$0xff]
                %232 = vst [vmem:[%s154 + $0x130] sm:$0xff] %v231
                %v233 = vld [vmem:[%s153 + $0x378] sm:$0xff]
                %234 = vst [vmem:[%s154 + $0x138] sm:$0xff] %v233
                %v235 = vld [vmem:[%s153 + $0x3c0] sm:$0xff]
                %236 = vst [vmem:[%s154 + $0x140] sm:$0xff] %v235
                %v237 = vld [vmem:[%s153 + $0x3c8] sm:$0xff]
                %238 = vst [vmem:[%s154 + $0x148] sm:$0xff] %v237
                %v239 = vld [vmem:[%s153 + $0x3d0] sm:$0xff]
                %240 = vst [vmem:[%s154 + $0x150] sm:$0xff] %v239
                %v241 = vld [vmem:[%s153 + $0x3d8] sm:$0xff]
                %242 = vst [vmem:[%s154 + $0x158] sm:$0xff] %v241
                %v243 = vld [vmem:[%s153 + $0x420] sm:$0xff]
                %244 = vst [vmem:[%s154 + $0x160] sm:$0xff] %v243
                %v245 = vld [vmem:[%s153 + $0x428] sm:$0xff]
                %246 = vst [vmem:[%s154 + $0x168] sm:$0xff] %v245
                %v247 = vld [vmem:[%s153 + $0x430] sm:$0xff]
                %248 = vst [vmem:[%s154 + $0x170] sm:$0xff] %v247
                %v249 = vld [vmem:[%s153 + $0x438] sm:$0xff]
                %250 = vst [vmem:[%s154 + $0x178] sm:$0xff] %v249
                %v251 = vld [vmem:[%s153 + $0x480] sm:$0xff]
                %252 = vst [vmem:[%s154 + $0x180] sm:$0xff] %v251
                %v253 = vld [vmem:[%s153 + $0x488] sm:$0xff]
                %254 = vst [vmem:[%s154 + $0x188] sm:$0xff] %v253
                %v255 = vld [vmem:[%s153 + $0x490] sm:$0xff]
                %256 = vst [vmem:[%s154 + $0x190] sm:$0xff] %v255
                %v257 = vld [vmem:[%s153 + $0x498] sm:$0xff]
                %258 = vst [vmem:[%s154 + $0x198] sm:$0xff] %v257
                %v259 = vld [vmem:[%s153 + $0x4e0] sm:$0xff]
                %260 = vst [vmem:[%s154 + $0x1a0] sm:$0xff] %v259
                %v261 = vld [vmem:[%s153 + $0x4e8] sm:$0xff]
                %262 = vst [vmem:[%s154 + $0x1a8] sm:$0xff] %v261
                %v263 = vld [vmem:[%s153 + $0x4f0] sm:$0xff]
                %264 = vst [vmem:[%s154 + $0x1b0] sm:$0xff] %v263
                %v265 = vld [vmem:[%s153 + $0x4f8] sm:$0xff]
                %266 = vst [vmem:[%s154 + $0x1b8] sm:$0xff] %v265
                %v267 = vld [vmem:[%s153 + $0x540] sm:$0xff]
                %268 = vst [vmem:[%s154 + $0x1c0] sm:$0xff] %v267
                %v269 = vld [vmem:[%s153 + $0x548] sm:$0xff]
                %270 = vst [vmem:[%s154 + $0x1c8] sm:$0xff] %v269
                %v271 = vld [vmem:[%s153 + $0x550] sm:$0xff]
                %272 = vst [vmem:[%s154 + $0x1d0] sm:$0xff] %v271
                %v273 = vld [vmem:[%s153 + $0x558] sm:$0xff]
                %274 = vst [vmem:[%s154 + $0x1d8] sm:$0xff] %v273
                %v275 = vld [vmem:[%s153 + $0x5a0] sm:$0xff]
                %276 = vst [vmem:[%s154 + $0x1e0] sm:$0xff] %v275
                %v277 = vld [vmem:[%s153 + $0x5a8] sm:$0xff]
                %278 = vst [vmem:[%s154 + $0x1e8] sm:$0xff] %v277
                %v279 = vld [vmem:[%s153 + $0x5b0] sm:$0xff]
                %280 = vst [vmem:[%s154 + $0x1f0] sm:$0xff] %v279
                %v281 = vld [vmem:[%s153 + $0x5b8] sm:$0xff]
                %282 = vst [vmem:[%s154 + $0x1f8] sm:$0xff] %v281
              $region37: #{generator_forward.3} parent=31 // loop_footer
                %s152 = sadd.s32 1, %s148
              $region38: #{generator_forward.3} parent=31 // loop_footer_branch
                %147 = sbr.rel target = $region34
              $region39: #{generator_forward.3} parent=31 // loop_exit
                _
            $region32: #{generator_forward.3} parent=27 // pred_fallthru
              _
            // Predicated region
            $region40: #{generator_forward.3} parent=27 // pred_check
              _
            $region41: #{generator_forward.3} parent=27 // pred_check_branch
              %284 = sbr.rel target = $region43
            $region42: #{generator_forward.3} parent=27 // pred_region
              _
            $region43: #{generator_forward.3} parent=27 // pred_fallthru
              _
          $region28: #{generator_forward.3} parent=23 // pred_fallthru
            _
          %285 = vnop
        $region24: #{generator_forward.3} parent=19 // pred_fallthru
          _
        // Predicated region
        $region44: #{generator_forward.3} parent=19 // pred_check
          %p286 = pneg %p79
        $region45: #{generator_forward.3} parent=19 // pred_check_branch
          %288 = sbr.rel (%p286) target = $region47
        $region46: #{generator_forward.3} parent=19 // pred_region
          %s289 = smul.u32 8, %s12
          %p290 = scmp.lt.s32.totalorder %s289, 23
          %s291 = scalar_select %p290, %s289, 23
          %s292 = scalar_lea.vmem %s2, %s291
          %s293 = smul.u32 8, %s12
        $region47: #{generator_forward.3} parent=19 // pred_fallthru
          _
      $region20: #{generator_forward.3} parent=5 // pred_fallthru
        _
      %p294 = scmp.le.s32.totalorder 1, %s12
      %p295 = scmp.lt.s32.totalorder %s12, 4
      %p296 = pnand %p294, %p295
      %p297 = pneg %p296
      // Predicated region
      $region48: #{generator_forward.3} parent=5 // pred_check
        _
      $region49: #{generator_forward.3} parent=5 // pred_check_branch
        %299 = sbr.rel (%p296) target = $region51
      $region50: #{generator_forward.3} parent=5 // pred_region
        %s300 = ssub.s32 %s12, 1
        %s301 = sand.u32 %s46, 1
        %s302 = sand.u32 %s46, 1
        %s303 = smul.addr %s302, 512
        %s304 = scalar_lea.vmem [#allocation2], %s303
        // Predicated region
        $region52: #{generator_forward.3} parent=50 // pred_check
          %p305 = pneg %p59
        $region53: #{generator_forward.3} parent=50 // pred_check_branch
          %307 = sbr.rel (%p305) target = $region55
        $region54: #{generator_forward.3} parent=50 // pred_region
          _
        $region55: #{generator_forward.3} parent=50 // pred_fallthru
          _
        %p308 = pneg %p33
        %p309 = pneg %p30
        %s310 = sand.u32 %s46, 1
        %s311 = sand.u32 %s46, 1
        %s312 = smul.addr %s311, 512
        %s313 = scalar_lea.vmem [#allocation2], %s312
        %p314 = pneg %p59
        %p315 = pneg %p56
        %s316 = smul.u32 8, %s17
        %p317 = scmp.lt.s32.totalorder %s316, 23
        %s318 = scalar_select %p317, %s316, 23
        %s319 = scalar_lea.vmem %s2, %s318
        %p320 = pneg %p85
        %p321 = pneg %p82
        %p322 = pneg %p111
        %p323 = pneg %p108
        %s324 = sand.u32 %s98, 1
        %s325 = scalar_lea.sflag [#allocation4], %s324
        %s326 = sand.u32 %s98, 1
        %s327 = smul.addr %s326, 64
        %s328 = scalar_lea.vmem [#allocation3], %s327
        %s329 = smul.u32 8, %s17
        %s330 = smul.u32 8, %s17
        %p331 = scmp.lt.s32.totalorder %s330, 23
        %s332 = scalar_select %p331, %s330, 23
        %s333 = scalar_lea.vmem %s2, %s332
        %s334 = smul.u32 8, %s17
        %s335 = smul.u32 8, %s17
        %v337 = vld [vmem:[%s0] sm:$0xf]
        %v338 = vld [vmem:[%s304] sm:$0xff]
        %v339 = vld [vmem:[%s304 + $0x8] sm:$0xff]
        %v340 = vld [vmem:[%s304 + $0x10] sm:$0xff]
        %v341 = vld [vmem:[%s304 + $0x18] sm:$0xff]
        %v342 = vld [vmem:[%s304 + $0x20] sm:$0xff]
        %v343 = vld [vmem:[%s304 + $0x28] sm:$0xff]
        %v344 = vld [vmem:[%s304 + $0x30] sm:$0xff]
        %v345 = vld [vmem:[%s304 + $0x38] sm:$0xff]
        %v346 = vld [vmem:[%s304 + $0x40] sm:$0xff]
        %v347 = vld [vmem:[%s304 + $0x48] sm:$0xff]
        %v348 = vld [vmem:[%s304 + $0x50] sm:$0xff]
        %v349 = vld [vmem:[%s304 + $0x58] sm:$0xff]
        %v350 = vld [vmem:[%s304 + $0x60] sm:$0xff]
        %v351 = vld [vmem:[%s304 + $0x68] sm:$0xff]
        %v352 = vld [vmem:[%s304 + $0x70] sm:$0xff]
        %v353 = vld [vmem:[%s304 + $0x78] sm:$0xff]
        %v354 = vld [vmem:[%s304 + $0x80] sm:$0xff]
        %v355 = vld [vmem:[%s304 + $0x88] sm:$0xff]
        %v356 = vld [vmem:[%s304 + $0x90] sm:$0xff]
        %v357 = vld [vmem:[%s304 + $0x98] sm:$0xff]
        %v358 = vld [vmem:[%s304 + $0xa0] sm:$0xff]
        %v359 = vld [vmem:[%s304 + $0xa8] sm:$0xff]
        %v360 = vld [vmem:[%s304 + $0xb0] sm:$0xff]
        %v361 = vld [vmem:[%s304 + $0xb8] sm:$0xff]
        %v362 = vld [vmem:[%s304 + $0xc0] sm:$0xff]
        %v363 = vld [vmem:[%s304 + $0xc8] sm:$0xff]
        %v364 = vld [vmem:[%s304 + $0xd0] sm:$0xff]
        %v365 = vld [vmem:[%s304 + $0xd8] sm:$0xff]
        %v366 = vld [vmem:[%s304 + $0xe0] sm:$0xff]
        %v367 = vld [vmem:[%s304 + $0xe8] sm:$0xff]
        %v368 = vld [vmem:[%s304 + $0xf0] sm:$0xff]
        %v369 = vld [vmem:[%s304 + $0xf8] sm:$0xff]
        %v370 = vld [vmem:[%s304 + $0x100] sm:$0xff]
        %v371 = vld [vmem:[%s304 + $0x108] sm:$0xff]
        %v372 = vld [vmem:[%s304 + $0x110] sm:$0xff]
        %v373 = vld [vmem:[%s304 + $0x118] sm:$0xff]
        %v374 = vld [vmem:[%s304 + $0x120] sm:$0xff]
        %v375 = vld [vmem:[%s304 + $0x128] sm:$0xff]
        %v376 = vld [vmem:[%s304 + $0x130] sm:$0xff]
        %v377 = vld [vmem:[%s304 + $0x138] sm:$0xff]
        %v378 = vld [vmem:[%s304 + $0x140] sm:$0xff]
        %v379 = vld [vmem:[%s304 + $0x148] sm:$0xff]
        %v380 = vld [vmem:[%s304 + $0x150] sm:$0xff]
        %v381 = vld [vmem:[%s304 + $0x158] sm:$0xff]
        %v382 = vld [vmem:[%s304 + $0x160] sm:$0xff]
        %v383 = vld [vmem:[%s304 + $0x168] sm:$0xff]
        %v384 = vld [vmem:[%s304 + $0x170] sm:$0xff]
        %v385 = vld [vmem:[%s304 + $0x178] sm:$0xff]
        %v386 = vld [vmem:[%s304 + $0x180] sm:$0xff]
        %v387 = vld [vmem:[%s304 + $0x188] sm:$0xff]
        %v388 = vld [vmem:[%s304 + $0x190] sm:$0xff]
        %v389 = vld [vmem:[%s304 + $0x198] sm:$0xff]
        %v390 = vld [vmem:[%s304 + $0x1a0] sm:$0xff]
        %v391 = vld [vmem:[%s304 + $0x1a8] sm:$0xff]
        %v392 = vld [vmem:[%s304 + $0x1b0] sm:$0xff]
        %v393 = vld [vmem:[%s304 + $0x1b8] sm:$0xff]
        %v394 = vld [vmem:[%s304 + $0x1c0] sm:$0xff]
        %v395 = vld [vmem:[%s304 + $0x1c8] sm:$0xff]
        %v396 = vld [vmem:[%s304 + $0x1d0] sm:$0xff]
        %v397 = vld [vmem:[%s304 + $0x1d8] sm:$0xff]
        %v398 = vld [vmem:[%s304 + $0x1e0] sm:$0xff]
        %v399 = vld [vmem:[%s304 + $0x1e8] sm:$0xff]
        %v400 = vld [vmem:[%s304 + $0x1f0] sm:$0xff]
        %v401 = vld [vmem:[%s304 + $0x1f8] sm:$0xff]
        %v402 = vld [vmem:[%s333] sm:$0xff]
        %v404 = vlaneseq
        %v405 = vshrl.u32 %v404, 7
        %v406 = vsub.s32 0, %v405
        %v407 = vrot.slane %v402, %v406
        %v408 = vlaneseq
        %v409 = vshrl.u32 %v408, 7
        %v410 = vsub.s32 1, %v409
        %v411 = vrot.slane %v402, %v410
        %v412 = vlaneseq
        %v413 = vshrl.u32 %v412, 7
        %v414 = vsub.s32 2, %v413
        %v415 = vrot.slane %v402, %v414
        %v416 = vlaneseq
        %v417 = vshrl.u32 %v416, 7
        %v418 = vsub.s32 3, %v417
        %v419 = vrot.slane %v402, %v418
        %v420 = vlaneseq
        %v421 = vshrl.u32 %v420, 7
        %v422 = vsub.s32 4, %v421
        %v423 = vrot.slane %v402, %v422
        %v424 = vlaneseq
        %v425 = vshrl.u32 %v424, 7
        %v426 = vsub.s32 5, %v425
        %v427 = vrot.slane %v402, %v426
        %v428 = vlaneseq
        %v429 = vshrl.u32 %v428, 7
        %v430 = vsub.s32 6, %v429
        %v431 = vrot.slane %v402, %v430
        %v432 = vlaneseq
        %v433 = vshrl.u32 %v432, 7
        %v434 = vsub.s32 7, %v433
        %v435 = vrot.slane %v402, %v434
        %v508 = vunpack.c.l.b16 %v338
        %v509 = vunpack.c.h.b16 %v338
        %v510 = vunpack.c.l.b16 %v339
        %v511 = vunpack.c.h.b16 %v339
        %v512 = vunpack.c.l.b16 %v340
        %v513 = vunpack.c.h.b16 %v340
        %v514 = vunpack.c.l.b16 %v341
        %v515 = vunpack.c.h.b16 %v341
        %v516 = vunpack.c.l.b16 %v342
        %v517 = vunpack.c.h.b16 %v342
        %v518 = vunpack.c.l.b16 %v343
        %v519 = vunpack.c.h.b16 %v343
        %v520 = vunpack.c.l.b16 %v344
        %v521 = vunpack.c.h.b16 %v344
        %v522 = vunpack.c.l.b16 %v345
        %v523 = vunpack.c.h.b16 %v345
        %v524 = vunpack.c.l.b16 %v346
        %v525 = vunpack.c.h.b16 %v346
        %v526 = vunpack.c.l.b16 %v347
        %v527 = vunpack.c.h.b16 %v347
        %v528 = vunpack.c.l.b16 %v348
        %v529 = vunpack.c.h.b16 %v348
        %v530 = vunpack.c.l.b16 %v349
        %v531 = vunpack.c.h.b16 %v349
        %v532 = vunpack.c.l.b16 %v350
        %v533 = vunpack.c.h.b16 %v350
        %v534 = vunpack.c.l.b16 %v351
        %v535 = vunpack.c.h.b16 %v351
        %v536 = vunpack.c.l.b16 %v352
        %v537 = vunpack.c.h.b16 %v352
        %v538 = vunpack.c.l.b16 %v353
        %v539 = vunpack.c.h.b16 %v353
        %v540 = vunpack.c.l.b16 %v354
        %v541 = vunpack.c.h.b16 %v354
        %v542 = vunpack.c.l.b16 %v355
        %v543 = vunpack.c.h.b16 %v355
        %v544 = vunpack.c.l.b16 %v356
        %v545 = vunpack.c.h.b16 %v356
        %v546 = vunpack.c.l.b16 %v357
        %v547 = vunpack.c.h.b16 %v357
        %v548 = vunpack.c.l.b16 %v358
        %v549 = vunpack.c.h.b16 %v358
        %v550 = vunpack.c.l.b16 %v359
        %v551 = vunpack.c.h.b16 %v359
        %v552 = vunpack.c.l.b16 %v360
        %v553 = vunpack.c.h.b16 %v360
        %v554 = vunpack.c.l.b16 %v361
        %v555 = vunpack.c.h.b16 %v361
        %v556 = vunpack.c.l.b16 %v362
        %v557 = vunpack.c.h.b16 %v362
        %v558 = vunpack.c.l.b16 %v363
        %v559 = vunpack.c.h.b16 %v363
        %v560 = vunpack.c.l.b16 %v364
        %v561 = vunpack.c.h.b16 %v364
        %v562 = vunpack.c.l.b16 %v365
        %v563 = vunpack.c.h.b16 %v365
        %v564 = vunpack.c.l.b16 %v366
        %v565 = vunpack.c.h.b16 %v366
        %v566 = vunpack.c.l.b16 %v367
        %v567 = vunpack.c.h.b16 %v367
        %v568 = vunpack.c.l.b16 %v368
        %v569 = vunpack.c.h.b16 %v368
        %v570 = vunpack.c.l.b16 %v369
        %v571 = vunpack.c.h.b16 %v369
        %v572 = vunpack.c.l.b16 %v370
        %v573 = vunpack.c.h.b16 %v370
        %v574 = vunpack.c.l.b16 %v371
        %v575 = vunpack.c.h.b16 %v371
        %v576 = vunpack.c.l.b16 %v372
        %v577 = vunpack.c.h.b16 %v372
        %v578 = vunpack.c.l.b16 %v373
        %v579 = vunpack.c.h.b16 %v373
        %v580 = vunpack.c.l.b16 %v374
        %v581 = vunpack.c.h.b16 %v374
        %v582 = vunpack.c.l.b16 %v375
        %v583 = vunpack.c.h.b16 %v375
        %v584 = vunpack.c.l.b16 %v376
        %v585 = vunpack.c.h.b16 %v376
        %v586 = vunpack.c.l.b16 %v377
        %v587 = vunpack.c.h.b16 %v377
        %v588 = vunpack.c.l.b16 %v378
        %v589 = vunpack.c.h.b16 %v378
        %v590 = vunpack.c.l.b16 %v379
        %v591 = vunpack.c.h.b16 %v379
        %v592 = vunpack.c.l.b16 %v380
        %v593 = vunpack.c.h.b16 %v380
        %v594 = vunpack.c.l.b16 %v381
        %v595 = vunpack.c.h.b16 %v381
        %v596 = vunpack.c.l.b16 %v382
        %v597 = vunpack.c.h.b16 %v382
        %v598 = vunpack.c.l.b16 %v383
        %v599 = vunpack.c.h.b16 %v383
        %v600 = vunpack.c.l.b16 %v384
        %v601 = vunpack.c.h.b16 %v384
        %v602 = vunpack.c.l.b16 %v385
        %v603 = vunpack.c.h.b16 %v385
        %v604 = vunpack.c.l.b16 %v386
        %v605 = vunpack.c.h.b16 %v386
        %v606 = vunpack.c.l.b16 %v387
        %v607 = vunpack.c.h.b16 %v387
        %v608 = vunpack.c.l.b16 %v388
        %v609 = vunpack.c.h.b16 %v388
        %v610 = vunpack.c.l.b16 %v389
        %v611 = vunpack.c.h.b16 %v389
        %v612 = vunpack.c.l.b16 %v390
        %v613 = vunpack.c.h.b16 %v390
        %v614 = vunpack.c.l.b16 %v391
        %v615 = vunpack.c.h.b16 %v391
        %v616 = vunpack.c.l.b16 %v392
        %v617 = vunpack.c.h.b16 %v392
        %v618 = vunpack.c.l.b16 %v393
        %v619 = vunpack.c.h.b16 %v393
        %v620 = vunpack.c.l.b16 %v394
        %v621 = vunpack.c.h.b16 %v394
        %v622 = vunpack.c.l.b16 %v395
        %v623 = vunpack.c.h.b16 %v395
        %v624 = vunpack.c.l.b16 %v396
        %v625 = vunpack.c.h.b16 %v396
        %v626 = vunpack.c.l.b16 %v397
        %v627 = vunpack.c.h.b16 %v397
        %v628 = vunpack.c.l.b16 %v398
        %v629 = vunpack.c.h.b16 %v398
        %v630 = vunpack.c.l.b16 %v399
        %v631 = vunpack.c.h.b16 %v399
        %v632 = vunpack.c.l.b16 %v400
        %v633 = vunpack.c.h.b16 %v400
        %v634 = vunpack.c.l.b16 %v401
        %v635 = vunpack.c.h.b16 %v401
        %v636 = vpack.c.b16 %v516, %v508
        %v637 = vpack.c.b16 %v517, %v509
        %v638 = vpack.c.b16 %v518, %v510
        %v639 = vpack.c.b16 %v519, %v511
        %v640 = vpack.c.b16 %v520, %v512
        %v641 = vpack.c.b16 %v521, %v513
        %v642 = vpack.c.b16 %v522, %v514
        %v643 = vpack.c.b16 %v523, %v515
        %v644 = vpack.c.b16 %v532, %v524
        %v645 = vpack.c.b16 %v533, %v525
        %v646 = vpack.c.b16 %v534, %v526
        %v647 = vpack.c.b16 %v535, %v527
        %v648 = vpack.c.b16 %v536, %v528
        %v649 = vpack.c.b16 %v537, %v529
        %v650 = vpack.c.b16 %v538, %v530
        %v651 = vpack.c.b16 %v539, %v531
        %v652 = vpack.c.b16 %v548, %v540
        %v653 = vpack.c.b16 %v549, %v541
        %v654 = vpack.c.b16 %v550, %v542
        %v655 = vpack.c.b16 %v551, %v543
        %v656 = vpack.c.b16 %v552, %v544
        %v657 = vpack.c.b16 %v553, %v545
        %v658 = vpack.c.b16 %v554, %v546
        %v659 = vpack.c.b16 %v555, %v547
        %v660 = vpack.c.b16 %v564, %v556
        %v661 = vpack.c.b16 %v565, %v557
        %v662 = vpack.c.b16 %v566, %v558
        %v663 = vpack.c.b16 %v567, %v559
        %v664 = vpack.c.b16 %v568, %v560
        %v665 = vpack.c.b16 %v569, %v561
        %v666 = vpack.c.b16 %v570, %v562
        %v667 = vpack.c.b16 %v571, %v563
        %v668 = vpack.c.b16 %v580, %v572
        %v669 = vpack.c.b16 %v581, %v573
        %v670 = vpack.c.b16 %v582, %v574
        %v671 = vpack.c.b16 %v583, %v575
        %v672 = vpack.c.b16 %v584, %v576
        %v673 = vpack.c.b16 %v585, %v577
        %v674 = vpack.c.b16 %v586, %v578
        %v675 = vpack.c.b16 %v587, %v579
        %v676 = vpack.c.b16 %v596, %v588
        %v677 = vpack.c.b16 %v597, %v589
        %v678 = vpack.c.b16 %v598, %v590
        %v679 = vpack.c.b16 %v599, %v591
        %v680 = vpack.c.b16 %v600, %v592
        %v681 = vpack.c.b16 %v601, %v593
        %v682 = vpack.c.b16 %v602, %v594
        %v683 = vpack.c.b16 %v603, %v595
        %v684 = vpack.c.b16 %v612, %v604
        %v685 = vpack.c.b16 %v613, %v605
        %v686 = vpack.c.b16 %v614, %v606
        %v687 = vpack.c.b16 %v615, %v607
        %v688 = vpack.c.b16 %v616, %v608
        %v689 = vpack.c.b16 %v617, %v609
        %v690 = vpack.c.b16 %v618, %v610
        %v691 = vpack.c.b16 %v619, %v611
        %v692 = vpack.c.b16 %v628, %v620
        %v693 = vpack.c.b16 %v629, %v621
        %v694 = vpack.c.b16 %v630, %v622
        %v695 = vpack.c.b16 %v631, %v623
        %v696 = vpack.c.b16 %v632, %v624
        %v697 = vpack.c.b16 %v633, %v625
        %v698 = vpack.c.b16 %v634, %v626
        %v699 = vpack.c.b16 %v635, %v627
        %764 = vmatprep.subr.bf16.mxu0 %v637
        %765 = vmatpush1.bf16.msra.mxu0 %v636
        %766 = vmatprep.subr.bf16.mxu0 %v645
        %767 = vmatpush1.bf16.msra.mxu0 %v644
        %768 = vmatprep.subr.bf16.mxu0 %v653
        %769 = vmatpush1.bf16.msra.mxu0 %v652
        %770 = vmatprep.subr.bf16.mxu0 %v661
        %771 = vmatpush1.bf16.msra.mxu0 %v660
        %772 = vmatprep.subr.bf16.mxu0 %v669
        %773 = vmatpush1.bf16.msra.mxu0 %v668
        %774 = vmatprep.subr.bf16.mxu0 %v677
        %775 = vmatpush1.bf16.msra.mxu0 %v676
        %776 = vmatprep.subr.bf16.mxu0 %v685
        %777 = vmatpush1.bf16.msra.mxu0 %v684
        %778 = vmatprep.subr.bf16.mxu0 %v693
        %779 = vmatpush1.bf16.msra.mxu0 %v692
        %780 = vmatprep.subr.bf16.mxu0 0
        %781 = vmatpush1.bf16.msra.mxu0 0
        %782 = vmatprep.subr.bf16.mxu0 0
        %783 = vmatpush1.bf16.msra.mxu0 0
        %784 = vmatprep.subr.bf16.mxu0 0
        %785 = vmatpush1.bf16.msra.mxu0 0
        %786 = vmatprep.subr.bf16.mxu0 0
        %787 = vmatpush1.bf16.msra.mxu0 0
        %788 = vmatprep.subr.bf16.mxu0 0
        %789 = vmatpush1.bf16.msra.mxu0 0
        %790 = vmatprep.subr.bf16.mxu0 0
        %791 = vmatpush1.bf16.msra.mxu0 0
        %792 = vmatprep.subr.bf16.mxu0 0
        %793 = vmatpush1.bf16.msra.mxu0 0
        %794 = vmatprep.subr.bf16.mxu0 0
        %795 = vmatpush1.bf16.msra.mxu0 0
        %796 = vmatprep.mubr.bf16.mxu0 0
        %797 = vmatmul.mubr.bf16.gmra.mrb[0].mxu0 %v337
        %v798 = vpop.f32.mrb[0].mxu0
        %v799 = vadd.f32 %v407, %v798
        %v800 = vpop.f32.mrb[0].mxu0
        %v801 = vadd.f32 %v411, %v800
        %v802 = vpop.f32.mrb[0].mxu0
        %v803 = vpop.f32.mrb[0].mxu0
        %804 = vdwg.mxu0
        %805 = vmatprep.subr.bf16.mxu0 %v639
        %806 = vmatpush1.bf16.msra.mxu0 %v638
        %807 = vmatprep.subr.bf16.mxu0 %v647
        %808 = vmatpush1.bf16.msra.mxu0 %v646
        %809 = vmatprep.subr.bf16.mxu0 %v655
        %810 = vmatpush1.bf16.msra.mxu0 %v654
        %811 = vmatprep.subr.bf16.mxu0 %v663
        %812 = vmatpush1.bf16.msra.mxu0 %v662
        %813 = vmatprep.subr.bf16.mxu0 %v671
        %814 = vmatpush1.bf16.msra.mxu0 %v670
        %815 = vmatprep.subr.bf16.mxu0 %v679
        %816 = vmatpush1.bf16.msra.mxu0 %v678
        %817 = vmatprep.subr.bf16.mxu0 %v687
        %818 = vmatpush1.bf16.msra.mxu0 %v686
        %819 = vmatprep.subr.bf16.mxu0 %v695
        %820 = vmatpush1.bf16.msra.mxu0 %v694
        %821 = vmatprep.subr.bf16.mxu0 0
        %822 = vmatpush1.bf16.msra.mxu0 0
        %823 = vmatprep.subr.bf16.mxu0 0
        %824 = vmatpush1.bf16.msra.mxu0 0
        %825 = vmatprep.subr.bf16.mxu0 0
        %826 = vmatpush1.bf16.msra.mxu0 0
        %827 = vmatprep.subr.bf16.mxu0 0
        %828 = vmatpush1.bf16.msra.mxu0 0
        %829 = vmatprep.subr.bf16.mxu0 0
        %830 = vmatpush1.bf16.msra.mxu0 0
        %831 = vmatprep.subr.bf16.mxu0 0
        %832 = vmatpush1.bf16.msra.mxu0 0
        %833 = vmatprep.subr.bf16.mxu0 0
        %834 = vmatpush1.bf16.msra.mxu0 0
        %835 = vmatprep.subr.bf16.mxu0 0
        %836 = vmatpush1.bf16.msra.mxu0 0
        %837 = vmatprep.mubr.bf16.mxu0 0
        %838 = vmatmul.mubr.bf16.gmra.mrb[0].mxu0 %v337
        %v839 = vpop.f32.mrb[0].mxu0
        %v840 = vadd.f32 %v415, %v839
        %v841 = vpop.f32.mrb[0].mxu0
        %v842 = vadd.f32 %v419, %v841
        %v843 = vpop.f32.mrb[0].mxu0
        %v844 = vpop.f32.mrb[0].mxu0
        %845 = vdwg.mxu0
        %846 = vmatprep.subr.bf16.mxu0 %v641
        %847 = vmatpush1.bf16.msra.mxu0 %v640
        %848 = vmatprep.subr.bf16.mxu0 %v649
        %849 = vmatpush1.bf16.msra.mxu0 %v648
        %850 = vmatprep.subr.bf16.mxu0 %v657
        %851 = vmatpush1.bf16.msra.mxu0 %v656
        %852 = vmatprep.subr.bf16.mxu0 %v665
        %853 = vmatpush1.bf16.msra.mxu0 %v664
        %854 = vmatprep.subr.bf16.mxu0 %v673
        %855 = vmatpush1.bf16.msra.mxu0 %v672
        %856 = vmatprep.subr.bf16.mxu0 %v681
        %857 = vmatpush1.bf16.msra.mxu0 %v680
        %858 = vmatprep.subr.bf16.mxu0 %v689
        %859 = vmatpush1.bf16.msra.mxu0 %v688
        %860 = vmatprep.subr.bf16.mxu0 %v697
        %861 = vmatpush1.bf16.msra.mxu0 %v696
        %862 = vmatprep.subr.bf16.mxu0 0
        %863 = vmatpush1.bf16.msra.mxu0 0
        %864 = vmatprep.subr.bf16.mxu0 0
        %865 = vmatpush1.bf16.msra.mxu0 0
        %866 = vmatprep.subr.bf16.mxu0 0
        %867 = vmatpush1.bf16.msra.mxu0 0
        %868 = vmatprep.subr.bf16.mxu0 0
        %869 = vmatpush1.bf16.msra.mxu0 0
        %870 = vmatprep.subr.bf16.mxu0 0
        %871 = vmatpush1.bf16.msra.mxu0 0
        %872 = vmatprep.subr.bf16.mxu0 0
        %873 = vmatpush1.bf16.msra.mxu0 0
        %874 = vmatprep.subr.bf16.mxu0 0
        %875 = vmatpush1.bf16.msra.mxu0 0
        %876 = vmatprep.subr.bf16.mxu0 0
        %877 = vmatpush1.bf16.msra.mxu0 0
        %878 = vmatprep.mubr.bf16.mxu0 0
        %879 = vmatmul.mubr.bf16.gmra.mrb[0].mxu0 %v337
        %v880 = vpop.f32.mrb[0].mxu0
        %v881 = vadd.f32 %v423, %v880
        %v882 = vpop.f32.mrb[0].mxu0
        %v883 = vadd.f32 %v427, %v882
        %v884 = vpop.f32.mrb[0].mxu0
        %v885 = vpop.f32.mrb[0].mxu0
        %886 = vdwg.mxu0
        %887 = vmatprep.subr.bf16.mxu0 %v643
        %888 = vmatpush1.bf16.msra.mxu0 %v642
        %889 = vmatprep.subr.bf16.mxu0 %v651
        %890 = vmatpush1.bf16.msra.mxu0 %v650
        %891 = vmatprep.subr.bf16.mxu0 %v659
        %892 = vmatpush1.bf16.msra.mxu0 %v658
        %893 = vmatprep.subr.bf16.mxu0 %v667
        %894 = vmatpush1.bf16.msra.mxu0 %v666
        %895 = vmatprep.subr.bf16.mxu0 %v675
        %896 = vmatpush1.bf16.msra.mxu0 %v674
        %897 = vmatprep.subr.bf16.mxu0 %v683
        %898 = vmatpush1.bf16.msra.mxu0 %v682
        %899 = vmatprep.subr.bf16.mxu0 %v691
        %900 = vmatpush1.bf16.msra.mxu0 %v690
        %901 = vmatprep.subr.bf16.mxu0 %v699
        %902 = vmatpush1.bf16.msra.mxu0 %v698
        %903 = vmatprep.subr.bf16.mxu0 0
        %904 = vmatpush1.bf16.msra.mxu0 0
        %905 = vmatprep.subr.bf16.mxu0 0
        %906 = vmatpush1.bf16.msra.mxu0 0
        %907 = vmatprep.subr.bf16.mxu0 0
        %908 = vmatpush1.bf16.msra.mxu0 0
        %909 = vmatprep.subr.bf16.mxu0 0
        %910 = vmatpush1.bf16.msra.mxu0 0
        %911 = vmatprep.subr.bf16.mxu0 0
        %912 = vmatpush1.bf16.msra.mxu0 0
        %913 = vmatprep.subr.bf16.mxu0 0
        %914 = vmatpush1.bf16.msra.mxu0 0
        %915 = vmatprep.subr.bf16.mxu0 0
        %916 = vmatpush1.bf16.msra.mxu0 0
        %917 = vmatprep.subr.bf16.mxu0 0
        %918 = vmatpush1.bf16.msra.mxu0 0
        %919 = vmatprep.mubr.bf16.mxu0 0
        %920 = vmatmul.mubr.bf16.gmra.mrb[0].mxu0 %v337
        %v921 = vpop.f32.mrb[0].mxu0
        %v922 = vadd.f32 %v431, %v921
        %v923 = vpop.f32.mrb[0].mxu0
        %v924 = vadd.f32 %v435, %v923
        %v925 = vpop.f32.mrb[0].mxu0
        %v926 = vpop.f32.mrb[0].mxu0
        %927 = vdwg.mxu0
        %v928 = vtanh.pop %v799
        %v929 = vtanh.pop %v801
        %v930 = vtanh.pop %v840
        %v931 = vtanh.pop %v842
        %v932 = vtanh.pop %v881
        %v933 = vtanh.pop %v883
        %v934 = vtanh.pop %v922
        %v935 = vtanh.pop %v924
        %936 = vst [vmem:[%s328] sm:$0xff] %v928
        %937 = vst [vmem:[%s328 + $0x8] sm:$0xff] %v929
        %938 = vst [vmem:[%s328 + $0x10] sm:$0xff] %v930
        %939 = vst [vmem:[%s328 + $0x18] sm:$0xff] %v931
        %940 = vst [vmem:[%s328 + $0x20] sm:$0xff] %v932
        %941 = vst [vmem:[%s328 + $0x28] sm:$0xff] %v933
        %942 = vst [vmem:[%s328 + $0x30] sm:$0xff] %v934
        %943 = vst [vmem:[%s328 + $0x38] sm:$0xff] %v935
        %s944 = sand.u32 %s98, 1
        %s945 = scalar_lea.sflag [#allocation4], %s944
        %s946 = sand.u32 %s98, 1
        %s947 = smul.addr %s946, 64
        %s948 = scalar_lea.vmem [#allocation3], %s947
        // Predicated region
        $region56: #{generator_forward.3} parent=50 // pred_check
          %p949 = pneg %p108
        $region57: #{generator_forward.3} parent=50 // pred_check_branch
          %951 = sbr.rel (%p949) target = $region59
        $region58: #{generator_forward.3} parent=50 // pred_region
          %s952 = smul.u32 8, %s17
          %s954 = ssub.s32 1024, 1024
          %955 = vsyncadd %s945, %s954
          %s956 = smul.addr %s952, 128
          %s957 = scalar_lea.hbm %s3, %s956
          %s959 = sshll.u32 %s948, 4
          %s960 = int_to_ptr.vmem [resolvable:$true] %s959
          %962 = dma.vmem_to_hbm [thread:$0]  %s960, 1024, %s957, %s945
        $region59: #{generator_forward.3} parent=50 // pred_fallthru
          _
      $region51: #{generator_forward.3} parent=5 // pred_fallthru
        _
      %p963 = scmp.le.s32.totalorder 2, %s12
      // Predicated region
      $region60: #{generator_forward.3} parent=5 // pred_check
        %p964 = pneg %p963
      $region61: #{generator_forward.3} parent=5 // pred_check_branch
        %966 = sbr.rel (%p964) target = $region63
      $region62: #{generator_forward.3} parent=5 // pred_region
        %s967 = ssub.s32 %s12, 2
        // Predicated region
        $region64: #{generator_forward.3} parent=62 // pred_check
          %p968 = pneg %p114
        $region65: #{generator_forward.3} parent=62 // pred_check_branch
          %970 = sbr.rel (%p968) target = $region67
        $region66: #{generator_forward.3} parent=62 // pred_region
          %s971 = sand.u32 %s99, 1
          %s972 = scalar_lea.sflag [#allocation4], %s971
          %s973 = sand.u32 %s99, 1
          %s974 = smul.addr %s973, 64
          %s975 = scalar_lea.vmem [#allocation3], %s974
          %976 = dma.done %s972, 1024
        $region67: #{generator_forward.3} parent=62 // pred_fallthru
          _
      $region63: #{generator_forward.3} parent=5 // pred_fallthru
        _
    $region6: #{generator_forward.3} parent=1 // loop_footer
      %s16 = sadd.s32 1, %s12
    $region7: #{generator_forward.3} parent=1 // loop_footer_branch
      %11 = sbr.rel target = $region3
    $region8: #{generator_forward.3} parent=1 // loop_exit
      _
    %977 = vsyncpa [#allocation4], 1
    %s978 = scalar_lea.sflag [#allocation4], 1
    %979 = vsyncpa %s978, 1

</llo_original>
